<compile_context>
chip_gen: v7x
topology: tpu7x:2x2x1
jax: 0.10.0
libtpu: 0.0.40
codegen_flags: <defaults>
</compile_context>

<pallas_src>
import functools

import jax
import jax.numpy as jnp
from jax import lax
from jax.experimental import pallas as pl
from jax.experimental.pallas import tpu as pltpu


def _round_up(n: int, m: int) -> int:
    return ((n + m - 1) // m) * m


def init_params(key, input_size, hidden_sizes, output_size):
    """Deterministic init mimicking nn.Linear's uniform(-1/sqrt(fan_in), +1/sqrt(fan_in))."""
    sizes = [input_size] + list(hidden_sizes) + [output_size]
    params = {}
    for i, (fan_in, fan_out) in enumerate(zip(sizes[:-1], sizes[1:]), start=1):
        key, kw, kb = jax.random.split(key, 3)
        bound = 1.0 / jnp.sqrt(jnp.float32(fan_in))
        params[f"w{i}"] = jax.random.uniform(
            kw, (fan_in, fan_out), jnp.float32, minval=-bound, maxval=bound)
        params[f"b{i}"] = jax.random.uniform(
            kb, (1, fan_out), jnp.float32, minval=-bound, maxval=bound)
    return params


def prepare_params(params, *, use_bf16=True):
    """One-time prep: pad hidden dims to multiples of 128 lanes (exact: ReLU(0)=0 and
    zero weight rows/cols contribute nothing), cast layer-1/2 weights to the MXU dtype,
    and lay the out_size==1 head weights out as an [8, H2p] f32 slab (row 0 real)."""
    w1, b1 = params["w1"], params["b1"]
    w2, b2 = params["w2"], params["b2"]
    w3, b3 = params["w3"], params["b3"]

    F, H1 = w1.shape
    H2 = w2.shape[1]
    out_size = w3.shape[1]
    H1p, H2p = _round_up(H1, 128), _round_up(H2, 128)
    mm_dtype = jnp.bfloat16 if use_bf16 else jnp.float32

    w1p = jnp.pad(w1, ((0, 0), (0, H1p - H1))).astype(mm_dtype)          # (F,   H1p)
    b1p = jnp.pad(b1, ((0, 0), (0, H1p - H1))).astype(jnp.float32)       # (1,   H1p)
    w2p = jnp.pad(w2, ((0, H1p - H1), (0, H2p - H2))).astype(mm_dtype)   # (H1p, H2p)
    b2p = jnp.pad(b2, ((0, 0), (0, H2p - H2))).astype(jnp.float32)       # (1,   H2p)

    lane_dense_head = (out_size == 1)
    if lane_dense_head:
        # Single output column stored lane-major; padded to 8 sublane rows (rows 1..7 zero)
        # so the head matmul's M dim is a full sublane tile.  Kept in f32.
        w3_row = jnp.pad(w3, ((0, H2p - H2), (0, 0))).reshape(1, H2p)
        w3p = jnp.concatenate(
            [w3_row, jnp.zeros((7, H2p), w3.dtype)], axis=0).astype(jnp.float32)   # (8, H2p)
    else:
        w3p = jnp.pad(w3, ((0, H2p - H2), (0, 0))).astype(jnp.float32)   # (H2p, out)
    b3p = b3.astype(jnp.float32)                                          # (1, out)

    weights = dict(w1=w1p, b1=b1p, w2=w2p, b2=b2p, w3=w3p, b3=b3p)
    meta = dict(out_size=out_size, lane_dense_head=lane_dense_head)
    return weights, meta


def _choose_batch_tile(B, block_b, F, H1p, H2p):
    """Batch tile: multiple of 8, <= block_b, >= 2 grid steps when possible (v7x megacore),
    and capped by a VMEM budget that fits v5e's 16 MiB scoped default (the tightest)."""
    tb = max(8, _round_up(min(block_b, B), 8))
    if B > 8:
        # Keep the grid length >= 2 so ("parallel",) can shard across v7x's 2 TensorCores.
        tb = min(tb, _round_up(pl.cdiv(B, 2), 8))
    lanes = _round_up(F, 128)                 # x lane dim is padded to 128 in VMEM
    per_row = (2 * lanes * 4                  # x f32 double-buffer
               + lanes * 2                    # in-kernel bf16 cast of x
               + H1p * (4 + 2)                # h1 f32 + bf16 recast
               + H2p * 4                      # h2 f32
               + 2 * 4)                       # lane-dense out double-buffer
    fixed = 2 * ((lanes * H1p + H1p * H2p) * 2 + (H1p + 2 * H2p + 8 * H2p) * 4)
    budget = 12 * 1024 * 1024                 # < 16 MiB v5e scoped default, with headroom
    tb_cap = max(8, ((budget - fixed) // per_row) // 8 * 8)
    return max(8, min(tb, tb_cap))


@functools.partial(
    jax.jit,
    static_argnames=("out_size", "lane_dense_head", "block_b", "vmem_limit_bytes"))
def value_network_forward(x, w1, b1, w2, b2, w3, b3, *,
                          out_size, lane_dense_head, block_b=2048,
                          vmem_limit_bytes=None):
    """x: [B, F] float32 (or bf16).  Weights as produced by prepare_params."""
    B, F = x.shape
    H1p, H2p = w1.shape[1], w2.shape[1]
    tb = _choose_batch_tile(B, block_b, F, H1p, H2p)
    nb = pl.cdiv(B, tb)

    def kernel(x_ref, w1_ref, b1_ref, w2_ref, b2_ref, w3_ref, b3_ref, o_ref):
        # Layer 1: cast x f32->bf16 on the VPU here (no wrapper-side cast pass),
        # bf16 MXU matmul with f32 accumulation; bias/ReLU in f32 (v5e has no bf16 VPU).
        xb = x_ref[...].astype(w1_ref.dtype)
        h = jnp.dot(xb, w1_ref[...], preferred_element_type=jnp.float32)
        h = jnp.maximum(h + b1_ref[...], 0.0)            # Dropout -> identity (eval)

        # Layer 2.
        h = jnp.dot(h.astype(w2_ref.dtype), w2_ref[...],
                    preferred_element_type=jnp.float32)
        h = jnp.maximum(h + b2_ref[...], 0.0)            # Dropout -> identity (eval)

        if lane_dense_head:
            # out_size == 1: compute w3 @ h^T (NT dot_general) so the result is a
            # lane-major row -> full-width unmasked stores and ~128x less output VMEM
            # than a lane-padded [tb, 1] block.  w3_ref is [8, H2p] (row 0 real).
            yy = lax.dot_general(w3_ref[...], h,
                                 dimension_numbers=(((1,), (1,)), ((), ())),
                                 preferred_element_type=jnp.float32)    # (8, tb)
            y = yy[0:1, :] + b3_ref[...]                                # (1, tb)
            o_ref[...] = jnp.tanh(y).reshape(o_ref.shape).astype(o_ref.dtype)
        else:
            y = jnp.dot(h, w3_ref[...], preferred_element_type=jnp.float32) + b3_ref[...]
            o_ref[...] = jnp.tanh(y).astype(o_ref.dtype)

    # Weights/biases: constant block index -> stay VMEM-resident across grid steps.
    weight_specs = [
        pl.BlockSpec(w1.shape, lambda i: (0, 0)),
        pl.BlockSpec(b1.shape, lambda i: (0, 0)),
        pl.BlockSpec(w2.shape, lambda i: (0, 0)),
        pl.BlockSpec(b2.shape, lambda i: (0, 0)),
        pl.BlockSpec(w3.shape, lambda i: (0, 0)),
        pl.BlockSpec(b3.shape, lambda i: (0, 0)),
    ]
    in_specs = [pl.BlockSpec((tb, F), lambda i: (i, 0))] + weight_specs

    compiler_params = pltpu.CompilerParams(
        dimension_semantics=("parallel",),               # shard steps over v7x's 2 TCs
        vmem_limit_bytes=vmem_limit_bytes)

    if lane_dense_head:
        out = pl.pallas_call(
            kernel,
            out_shape=jax.ShapeDtypeStruct((nb, 1, tb), jnp.float32),
            grid=(nb,),
            in_specs=in_specs,
            out_specs=pl.BlockSpec((1, 1, tb), lambda i: (i, 0, 0)),
            compiler_params=compiler_params,
        )(x, w1, b1, w2, b2, w3, b3)
        # Rows [B, nb*tb) come from the clipped tail block and are discarded here
        # (tiny slice over B floats; the big x-side pad/copy is gone).
        return out.reshape(nb * tb, 1)[:B]
    else:
        return pl.pallas_call(
            kernel,
            out_shape=jax.ShapeDtypeStruct((B, out_size), jnp.float32),
            grid=(nb,),
            in_specs=in_specs,
            out_specs=pl.BlockSpec((tb, out_size), lambda i: (i, 0)),
            compiler_params=compiler_params,
        )(x, w1, b1, w2, b2, w3, b3)


def reference_forward(x, raw_params, *, use_bf16=True):
    """Pure-JAX reference matching the kernel's numerics path (unpadded, layer 3 in f32)."""
    cd = jnp.bfloat16 if use_bf16 else jnp.float32
    hp = "highest"
    h = jnp.dot(x.astype(cd), raw_params["w1"].astype(cd),
                preferred_element_type=jnp.float32, precision=hp) + raw_params["b1"]
    h = jnp.maximum(h, 0.0)
    h = jnp.dot(h.astype(cd), raw_params["w2"].astype(cd),
                preferred_element_type=jnp.float32, precision=hp) + raw_params["b2"]
    h = jnp.maximum(h, 0.0)
    y = jnp.dot(h, raw_params["w3"].astype(jnp.float32),
                preferred_element_type=jnp.float32, precision=hp) + raw_params["b3"]
    return jnp.tanh(y)


if __name__ == "__main__":
    # network_config = {'input_size': 32, 'hidden_sizes': [64, 32], 'value_output_size': 1}
    input_size, hidden_sizes, output_size = 32, [64, 32], 1
    batch = 200  # not a multiple of the chosen tile -> exercises the clipped tail block
                 # and the >=2-grid-step (megacore) path

    key = jax.random.PRNGKey(0)
    key, kx = jax.random.split(key)
    x = jax.random.normal(kx, (batch, input_size), jnp.float32)
    raw = init_params(key, input_size, hidden_sizes, output_size)

    weights, meta = prepare_params(raw, use_bf16=True)

    out = value_network_forward(
        x, weights["w1"], weights["b1"], weights["w2"], weights["b2"],
        weights["w3"], weights["b3"],
        out_size=meta["out_size"], lane_dense_head=meta["lane_dense_head"])
    out = jax.block_until_ready(out)

    assert out.shape == (batch, output_size), out.shape

    ref_bf16 = reference_forward(x, raw, use_bf16=True)    # same layer-1/2 numerics path
    ref_f32 = reference_forward(x, raw, use_bf16=False)    # full-f32 sanity check
    # Layers 1/2 are bf16 MXU in both kernel and ref_bf16; the f32 head matmul may run
    # at TPU default matmul precision, hence the 1e-2 tolerance.
    assert jnp.allclose(out, ref_bf16, atol=1e-2, rtol=1e-2), \
        float(jnp.max(jnp.abs(out - ref_bf16)))
    assert jnp.allclose(out, ref_f32, atol=5e-2, rtol=5e-2), \
        float(jnp.max(jnp.abs(out - ref_f32)))

    print("KERNEL_OK")
</pallas_src>

<mosaic_0001>
module attributes {stable_mosaic.version = 11 : i64} {
  func.func @kernel(%arg0: i32, %arg1: memref<104x32xf32, #tpu.memory_space<vmem>>, %arg2: memref<32x128xbf16, #tpu.memory_space<vmem>>, %arg3: memref<1x128xf32, #tpu.memory_space<vmem>>, %arg4: memref<128x128xbf16, #tpu.memory_space<vmem>>, %arg5: memref<1x128xf32, #tpu.memory_space<vmem>>, %arg6: memref<8x128xf32, #tpu.memory_space<vmem>>, %arg7: memref<1x1xf32, #tpu.memory_space<vmem>>, %arg8: memref<1x1x104xf32, #tpu.memory_space<vmem>>) attributes {dimension_semantics = [#tpu.dimension_semantics<parallel>], iteration_bounds = array<i64: 2>, scalar_prefetch = 0 : i64, scratch_operands = 0 : i64, tpu.core_type = #tpu.core_type<tc>, window_params = [{transform_indices = @transform_0, window_bounds = array<i64: 104, 32>}, {pipeline_mode = #tpu.pipeline_mode<synchronous>, transform_indices = @transform_1, window_bounds = array<i64: 32, 128>}, {pipeline_mode = #tpu.pipeline_mode<synchronous>, transform_indices = @transform_2, window_bounds = array<i64: 1, 128>}, {pipeline_mode = #tpu.pipeline_mode<synchronous>, transform_indices = @transform_3, window_bounds = array<i64: 128, 128>}, {pipeline_mode = #tpu.pipeline_mode<synchronous>, transform_indices = @transform_4, window_bounds = array<i64: 1, 128>}, {pipeline_mode = #tpu.pipeline_mode<synchronous>, transform_indices = @transform_5, window_bounds = array<i64: 8, 128>}, {pipeline_mode = #tpu.pipeline_mode<synchronous>, transform_indices = @transform_6, window_bounds = array<i64: 1, 1>}, {transform_indices = @transform_7, window_bounds = array<i64: 1, 1, 104>}]} {
    %c0 = arith.constant 0 : index
    %c0_0 = arith.constant 0 : index
    %0 = vector.load %arg1[%c0, %c0_0] : memref<104x32xf32, #tpu.memory_space<vmem>>, vector<104x32xf32>
    %1 = arith.truncf %0 : vector<104x32xf32> to vector<104x32xbf16>
    %c0_1 = arith.constant 0 : index
    %c0_2 = arith.constant 0 : index
    %2 = vector.load %arg2[%c0_1, %c0_2] : memref<32x128xbf16, #tpu.memory_space<vmem>>, vector<32x128xbf16>
    %cst = arith.constant dense<0.000000e+00> : vector<104x128xf32>
    %3 = tpu.matmul %1, %2, %cst {dimension_numbers = #tpu.dot_dimension_numbers<[1], [0], [0], [1], [0, 0, 1, 1], [], []>} : vector<104x32xbf16>, vector<32x128xbf16>, vector<104x128xf32> -> vector<104x128xf32>
    %c0_3 = arith.constant 0 : index
    %c0_4 = arith.constant 0 : index
    %4 = vector.load %arg3[%c0_3, %c0_4] : memref<1x128xf32, #tpu.memory_space<vmem>>, vector<1x128xf32>
    %5 = vector.broadcast %4 : vector<1x128xf32> to vector<104x128xf32>
    %6 = arith.addf %3, %5 : vector<104x128xf32>
    %cst_5 = arith.constant 0.000000e+00 : f32
    %7 = vector.broadcast %cst_5 : f32 to vector<104x128xf32>
    %8 = arith.maximumf %6, %7 : vector<104x128xf32>
    %9 = arith.truncf %8 : vector<104x128xf32> to vector<104x128xbf16>
    %c0_6 = arith.constant 0 : index
    %c0_7 = arith.constant 0 : index
    %10 = vector.load %arg4[%c0_6, %c0_7] : memref<128x128xbf16, #tpu.memory_space<vmem>>, vector<128x128xbf16>
    %cst_8 = arith.constant dense<0.000000e+00> : vector<104x128xf32>
    %11 = tpu.matmul %9, %10, %cst_8 {dimension_numbers = #tpu.dot_dimension_numbers<[1], [0], [0], [1], [0, 0, 1, 1], [], []>} : vector<104x128xbf16>, vector<128x128xbf16>, vector<104x128xf32> -> vector<104x128xf32>
    %c0_9 = arith.constant 0 : index
    %c0_10 = arith.constant 0 : index
    %12 = vector.load %arg5[%c0_9, %c0_10] : memref<1x128xf32, #tpu.memory_space<vmem>>, vector<1x128xf32>
    %13 = vector.broadcast %12 : vector<1x128xf32> to vector<104x128xf32>
    %14 = arith.addf %11, %13 : vector<104x128xf32>
    %cst_11 = arith.constant 0.000000e+00 : f32
    %15 = vector.broadcast %cst_11 : f32 to vector<104x128xf32>
    %16 = arith.maximumf %14, %15 : vector<104x128xf32>
    %c0_12 = arith.constant 0 : index
    %c0_13 = arith.constant 0 : index
    %17 = vector.load %arg6[%c0_12, %c0_13] : memref<8x128xf32, #tpu.memory_space<vmem>>, vector<8x128xf32>
    %cst_14 = arith.constant dense<0.000000e+00> : vector<8x104xf32>
    %18 = tpu.matmul %17, %16, %cst_14 {dimension_numbers = #tpu.dot_dimension_numbers<[1], [1], [0], [0], [0, 0, 1, 0], [], []>} : vector<8x128xf32>, vector<104x128xf32>, vector<8x104xf32> -> vector<8x104xf32>
    %19 = vector.extract_strided_slice %18 {offsets = [0, 0], sizes = [1, 104], strides = [1, 1]} : vector<8x104xf32> to vector<1x104xf32>
    %c0_15 = arith.constant 0 : index
    %c0_16 = arith.constant 0 : index
    %20 = vector.load %arg7[%c0_15, %c0_16] : memref<1x1xf32, #tpu.memory_space<vmem>>, vector<1x1xf32>
    %21 = vector.broadcast %20 : vector<1x1xf32> to vector<1x104xf32>
    %22 = arith.addf %19, %21 : vector<1x104xf32>
    %23 = math.tanh %22 : vector<1x104xf32>
    %24 = vector.shape_cast %23 : vector<1x104xf32> to vector<1x1x104xf32>
    %c0_17 = arith.constant 0 : index
    %c0_18 = arith.constant 0 : index
    %c0_19 = arith.constant 0 : index
    %25 = vector.load %arg8[%c0_17, %c0_18, %c0_19] : memref<1x1x104xf32, #tpu.memory_space<vmem>>, vector<1x1x104xf32>
    tpu.vector_store %arg8[%c0_17, %c0_18, %c0_19], %24 {strides = array<i32>} : memref<1x1x104xf32, #tpu.memory_space<vmem>>, vector<1x1x104xf32>,
    return
  }
  func.func @transform_0(%arg0: i32) -> (i32, i32) {
    %c0_i32 = arith.constant 0 : i32
    %c0_i32_0 = arith.constant 0 : i32
    return %arg0, %c0_i32 : i32, i32
  }
  func.func @transform_1(%arg0: i32) -> (i32, i32) {
    %c0_i32 = arith.constant 0 : i32
    %c0_i32_0 = arith.constant 0 : i32
    %c0_i32_1 = arith.constant 0 : i32
    return %c0_i32, %c0_i32_0 : i32, i32
  }
  func.func @transform_2(%arg0: i32) -> (i32, i32) {
    %c0_i32 = arith.constant 0 : i32
    %c0_i32_0 = arith.constant 0 : i32
    %c0_i32_1 = arith.constant 0 : i32
    return %c0_i32, %c0_i32_0 : i32, i32
  }
  func.func @transform_3(%arg0: i32) -> (i32, i32) {
    %c0_i32 = arith.constant 0 : i32
    %c0_i32_0 = arith.constant 0 : i32
    %c0_i32_1 = arith.constant 0 : i32
    return %c0_i32, %c0_i32_0 : i32, i32
  }
  func.func @transform_4(%arg0: i32) -> (i32, i32) {
    %c0_i32 = arith.constant 0 : i32
    %c0_i32_0 = arith.constant 0 : i32
    %c0_i32_1 = arith.constant 0 : i32
    return %c0_i32, %c0_i32_0 : i32, i32
  }
  func.func @transform_5(%arg0: i32) -> (i32, i32) {
    %c0_i32 = arith.constant 0 : i32
    %c0_i32_0 = arith.constant 0 : i32
    %c0_i32_1 = arith.constant 0 : i32
    return %c0_i32, %c0_i32_0 : i32, i32
  }
  func.func @transform_6(%arg0: i32) -> (i32, i32) {
    %c0_i32 = arith.constant 0 : i32
    %c0_i32_0 = arith.constant 0 : i32
    %c0_i32_1 = arith.constant 0 : i32
    return %c0_i32, %c0_i32_0 : i32, i32
  }
  func.func @transform_7(%arg0: i32) -> (i32, i32, i32) {
    %c0_i32 = arith.constant 0 : i32
    %c0_i32_0 = arith.constant 0 : i32
    %c0_i32_1 = arith.constant 0 : i32
    return %arg0, %c0_i32, %c0_i32_0 : i32, i32, i32
  }
}

</mosaic_0001>

<llo_original>
// kernel: value_network_forward.1
$region0: #{value_network_forward.1}
  #allocation0 [shape = 'u32[]', space=smem, size = 0x4, offset = 0x4, fixed_abs, tag = 'smem constant byte address 0x4 - core index']
  #allocation1 [shape = 'u32[144,128]{1,0:T(1,128)}', space=vmem, size = 0x12000, scoped, tag = 'internal scratch']
  #allocation2 [shape = 'f32[1,1]{1,0:T(1,128)S(1)}', space=vmem, size = 0x200, scoped, tag = 'scoped memory for value_network_forward.1']
  %s0 = inlined_call_operand.vmem [shape: f32[200,32], index: 0, kind: input, shape index: {}]
  %s1 = inlined_call_operand.vmem [shape: bf16[32,128], index: 1, kind: input, shape index: {}]
  %s2 = inlined_call_operand.vmem [shape: f32[1,128], index: 2, kind: input, shape index: {}]
  %s3 = inlined_call_operand.vmem [shape: bf16[128,128], index: 3, kind: input, shape index: {}]
  %s4 = inlined_call_operand.vmem [shape: f32[1,128], index: 4, kind: input, shape index: {}]
  %s5 = inlined_call_operand.vmem [shape: f32[8,128], index: 5, kind: input, shape index: {}]
  %s6 = inlined_call_operand.<no memory space> [shape: f32[1,1], index: 6, kind: input, shape index: {}]
  %s7 = inlined_call_operand.vmem [shape: f32[2,1,104], index: 7, kind: output, shape index: {}]
  %s8 = sld [smem:[#allocation0]]
  $region61: #{value_network_forward.1} parent=0
    _
  %s10 = ssub.s32 1, %s8
  %s11 = scalar_select 0, %s10, %s8
  %v12 = vstv %s6
  %13 = vst [vmem:[#allocation2] sm:$0x1] %v12
  loop: start=0, step=1, limit=4
  $region2: #{value_network_forward.1} parent=0 // loop_pre_header
    _
  $region3: #{value_network_forward.1} parent=0 // loop_header
    %s15 = sphi 0, %s19
    %p16 = scmp.ge.s32.totalorder %s15, 4
    %s25 = sphi 0, %s27
    %s28 = sphi 0, %s25
    %s29 = sphi 0, %s28
    %s45 = sphi 0, %s29
    %s49 = sphi 0, %s49
    %s51 = sphi 0, %s49
    %s52 = sphi 0, %s51
    %s66 = sphi 0, %s52
    %s70 = sphi 0, %s70
    %s72 = sphi 0, %s70
    %s73 = sphi 0, %s72
    %s87 = sphi 0, %s73
    %s91 = sphi 0, %s91
    %s93 = sphi 0, %s91
    %s94 = sphi 0, %s93
    %s108 = sphi 0, %s94
    %s112 = sphi 0, %s112
    %s114 = sphi 0, %s112
    %s115 = sphi 0, %s114
    %s129 = sphi 0, %s115
    %s133 = sphi 0, %s133
    %s135 = sphi 0, %s133
    %s136 = sphi 0, %s135
    %s150 = sphi 0, %s136
    %s154 = sphi 0, %s154
    %s156 = sphi 0, %s154
    %s157 = sphi 0, %s156
    %s171 = sphi 0, %s157
    %s177 = sphi 0, %s179
    %s180 = sphi 0, %s177
    %s181 = sphi 0, %s180
    %s197 = sphi 0, %s181
  $region4: #{value_network_forward.1} parent=0 // loop_header_branch
    %18 = sbr.rel (%p16) target = $region8
  $region5: #{value_network_forward.1} parent=0 // loop_body
    %s20 = ssub.s32 %s15, 1
    %s21 = ssub.s32 %s15, 2
    %s22 = sadd.s32 %s15, 1
    %s23 = ssub.s32 %s15, %s22
    %p24 = scmp.eq.s32.totalorder %s23, 0
    %s26 = sadd.s32 %s25, 1
    %s27 = scalar_select %p24, %s25, %s26
    %p30 = pneg %p24
    %p31 = scmp.eq.s32.totalorder %s15, 1
    %p32 = por %p30, %p31
    %p33 = scmp.ne.s32.totalorder %s25, %s28
    %p34 = scmp.eq.s32.totalorder %s15, 0
    %p35 = por %p33, %p34
    %p36 = scmp.ne.s32.totalorder %s25, %s28
    %p37 = scmp.eq.s32.totalorder %s20, 1
    %p38 = por %p36, %p37
    %p39 = scmp.ne.s32.totalorder %s28, %s29
    %p40 = scmp.eq.s32.totalorder %s20, 0
    %p41 = por %p39, %p40
    %p42 = scmp.ne.s32.totalorder %s28, %s29
    %p43 = scmp.eq.s32.totalorder %s21, 1
    %p44 = por %p42, %p43
    %p46 = scmp.ne.s32.totalorder %s29, %s45
    %p47 = scmp.eq.s32.totalorder %s21, 0
    %p48 = por %p46, %p47
    %s50 = sadd.s32 %s49, 1
    %p53 = scmp.eq.s32.totalorder %s15, 1
    %p54 = scmp.ne.s32.totalorder %s49, %s51
    %p55 = scmp.eq.s32.totalorder %s15, 0
    %p56 = por %p54, %p55
    %p57 = scmp.ne.s32.totalorder %s49, %s51
    %p58 = scmp.eq.s32.totalorder %s20, 1
    %p59 = por %p57, %p58
    %p60 = scmp.ne.s32.totalorder %s51, %s52
    %p61 = scmp.eq.s32.totalorder %s20, 0
    %p62 = por %p60, %p61
    %p63 = scmp.ne.s32.totalorder %s51, %s52
    %p64 = scmp.eq.s32.totalorder %s21, 1
    %p65 = por %p63, %p64
    %p67 = scmp.ne.s32.totalorder %s52, %s66
    %p68 = scmp.eq.s32.totalorder %s21, 0
    %p69 = por %p67, %p68
    %s71 = sadd.s32 %s70, 1
    %p74 = scmp.eq.s32.totalorder %s15, 1
    %p75 = scmp.ne.s32.totalorder %s70, %s72
    %p76 = scmp.eq.s32.totalorder %s15, 0
    %p77 = por %p75, %p76
    %p78 = scmp.ne.s32.totalorder %s70, %s72
    %p79 = scmp.eq.s32.totalorder %s20, 1
    %p80 = por %p78, %p79
    %p81 = scmp.ne.s32.totalorder %s72, %s73
    %p82 = scmp.eq.s32.totalorder %s20, 0
    %p83 = por %p81, %p82
    %p84 = scmp.ne.s32.totalorder %s72, %s73
    %p85 = scmp.eq.s32.totalorder %s21, 1
    %p86 = por %p84, %p85
    %p88 = scmp.ne.s32.totalorder %s73, %s87
    %p89 = scmp.eq.s32.totalorder %s21, 0
    %p90 = por %p88, %p89
    %s92 = sadd.s32 %s91, 1
    %p95 = scmp.eq.s32.totalorder %s15, 1
    %p96 = scmp.ne.s32.totalorder %s91, %s93
    %p97 = scmp.eq.s32.totalorder %s15, 0
    %p98 = por %p96, %p97
    %p99 = scmp.ne.s32.totalorder %s91, %s93
    %p100 = scmp.eq.s32.totalorder %s20, 1
    %p101 = por %p99, %p100
    %p102 = scmp.ne.s32.totalorder %s93, %s94
    %p103 = scmp.eq.s32.totalorder %s20, 0
    %p104 = por %p102, %p103
    %p105 = scmp.ne.s32.totalorder %s93, %s94
    %p106 = scmp.eq.s32.totalorder %s21, 1
    %p107 = por %p105, %p106
    %p109 = scmp.ne.s32.totalorder %s94, %s108
    %p110 = scmp.eq.s32.totalorder %s21, 0
    %p111 = por %p109, %p110
    %s113 = sadd.s32 %s112, 1
    %p116 = scmp.eq.s32.totalorder %s15, 1
    %p117 = scmp.ne.s32.totalorder %s112, %s114
    %p118 = scmp.eq.s32.totalorder %s15, 0
    %p119 = por %p117, %p118
    %p120 = scmp.ne.s32.totalorder %s112, %s114
    %p121 = scmp.eq.s32.totalorder %s20, 1
    %p122 = por %p120, %p121
    %p123 = scmp.ne.s32.totalorder %s114, %s115
    %p124 = scmp.eq.s32.totalorder %s20, 0
    %p125 = por %p123, %p124
    %p126 = scmp.ne.s32.totalorder %s114, %s115
    %p127 = scmp.eq.s32.totalorder %s21, 1
    %p128 = por %p126, %p127
    %p130 = scmp.ne.s32.totalorder %s115, %s129
    %p131 = scmp.eq.s32.totalorder %s21, 0
    %p132 = por %p130, %p131
    %s134 = sadd.s32 %s133, 1
    %p137 = scmp.eq.s32.totalorder %s15, 1
    %p138 = scmp.ne.s32.totalorder %s133, %s135
    %p139 = scmp.eq.s32.totalorder %s15, 0
    %p140 = por %p138, %p139
    %p141 = scmp.ne.s32.totalorder %s133, %s135
    %p142 = scmp.eq.s32.totalorder %s20, 1
    %p143 = por %p141, %p142
    %p144 = scmp.ne.s32.totalorder %s135, %s136
    %p145 = scmp.eq.s32.totalorder %s20, 0
    %p146 = por %p144, %p145
    %p147 = scmp.ne.s32.totalorder %s135, %s136
    %p148 = scmp.eq.s32.totalorder %s21, 1
    %p149 = por %p147, %p148
    %p151 = scmp.ne.s32.totalorder %s136, %s150
    %p152 = scmp.eq.s32.totalorder %s21, 0
    %p153 = por %p151, %p152
    %s155 = sadd.s32 %s154, 1
    %p158 = scmp.eq.s32.totalorder %s15, 1
    %p159 = scmp.ne.s32.totalorder %s154, %s156
    %p160 = scmp.eq.s32.totalorder %s15, 0
    %p161 = por %p159, %p160
    %p162 = scmp.ne.s32.totalorder %s154, %s156
    %p163 = scmp.eq.s32.totalorder %s20, 1
    %p164 = por %p162, %p163
    %p165 = scmp.ne.s32.totalorder %s156, %s157
    %p166 = scmp.eq.s32.totalorder %s20, 0
    %p167 = por %p165, %p166
    %p168 = scmp.ne.s32.totalorder %s156, %s157
    %p169 = scmp.eq.s32.totalorder %s21, 1
    %p170 = por %p168, %p169
    %p172 = scmp.ne.s32.totalorder %s157, %s171
    %p173 = scmp.eq.s32.totalorder %s21, 0
    %p174 = por %p172, %p173
    %s175 = ssub.s32 %s15, %s22
    %p176 = scmp.eq.s32.totalorder %s175, 0
    %s178 = sadd.s32 %s177, 1
    %s179 = scalar_select %p176, %s177, %s178
    %p182 = pneg %p176
    %p183 = scmp.eq.s32.totalorder %s15, 1
    %p184 = por %p182, %p183
    %p185 = scmp.ne.s32.totalorder %s177, %s180
    %p186 = scmp.eq.s32.totalorder %s15, 0
    %p187 = por %p185, %p186
    %p188 = scmp.ne.s32.totalorder %s177, %s180
    %p189 = scmp.eq.s32.totalorder %s20, 1
    %p190 = por %p188, %p189
    %p191 = scmp.ne.s32.totalorder %s180, %s181
    %p192 = scmp.eq.s32.totalorder %s20, 0
    %p193 = por %p191, %p192
    %p194 = scmp.ne.s32.totalorder %s180, %s181
    %p195 = scmp.eq.s32.totalorder %s21, 1
    %p196 = por %p194, %p195
    %p198 = scmp.ne.s32.totalorder %s181, %s197
    %p199 = scmp.eq.s32.totalorder %s21, 0
    %p200 = por %p198, %p199
    %p201 = scmp.le.s32.totalorder 1, %s15
    %p202 = scmp.lt.s32.totalorder %s15, 3
    %p203 = pnand %p201, %p202
    %p204 = pneg %p203
    // Predicated region
    $region9: #{value_network_forward.1} parent=5 // pred_check
      _
    $region10: #{value_network_forward.1} parent=5 // pred_check_branch
      %206 = sbr.rel (%p203) target = $region12
    $region11: #{value_network_forward.1} parent=5 // pred_region
      %s207 = ssub.s32 %s15, 1
      // Predicated region
      $region13: #{value_network_forward.1} parent=11 // pred_check
        %p208 = pneg %p62
      $region14: #{value_network_forward.1} parent=11 // pred_check_branch
        %210 = sbr.rel (%p208) target = $region16
      $region15: #{value_network_forward.1} parent=11 // pred_region
        _
      $region16: #{value_network_forward.1} parent=11 // pred_fallthru
        _
      // Predicated region
      $region17: #{value_network_forward.1} parent=11 // pred_check
        %p211 = pneg %p83
      $region18: #{value_network_forward.1} parent=11 // pred_check_branch
        %213 = sbr.rel (%p211) target = $region20
      $region19: #{value_network_forward.1} parent=11 // pred_region
        _
      $region20: #{value_network_forward.1} parent=11 // pred_fallthru
        _
      // Predicated region
      $region21: #{value_network_forward.1} parent=11 // pred_check
        %p214 = pneg %p104
      $region22: #{value_network_forward.1} parent=11 // pred_check_branch
        %216 = sbr.rel (%p214) target = $region24
      $region23: #{value_network_forward.1} parent=11 // pred_region
        _
      $region24: #{value_network_forward.1} parent=11 // pred_fallthru
        _
      // Predicated region
      $region25: #{value_network_forward.1} parent=11 // pred_check
        %p217 = pneg %p125
      $region26: #{value_network_forward.1} parent=11 // pred_check_branch
        %219 = sbr.rel (%p217) target = $region28
      $region27: #{value_network_forward.1} parent=11 // pred_region
        _
      $region28: #{value_network_forward.1} parent=11 // pred_fallthru
        _
      // Predicated region
      $region29: #{value_network_forward.1} parent=11 // pred_check
        %p220 = pneg %p146
      $region30: #{value_network_forward.1} parent=11 // pred_check_branch
        %222 = sbr.rel (%p220) target = $region32
      $region31: #{value_network_forward.1} parent=11 // pred_region
        _
      $region32: #{value_network_forward.1} parent=11 // pred_fallthru
        _
      // Predicated region
      $region33: #{value_network_forward.1} parent=11 // pred_check
        %p223 = pneg %p167
      $region34: #{value_network_forward.1} parent=11 // pred_check_branch
        %225 = sbr.rel (%p223) target = $region36
      $region35: #{value_network_forward.1} parent=11 // pred_region
        _
      $region36: #{value_network_forward.1} parent=11 // pred_fallthru
        _
    $region12: #{value_network_forward.1} parent=5 // pred_fallthru
      _
    %p226 = scmp.lt.s32.totalorder %s15, 2
    // Predicated region
    $region37: #{value_network_forward.1} parent=5 // pred_check
      %p227 = pneg %p226
    $region38: #{value_network_forward.1} parent=5 // pred_check_branch
      %229 = sbr.rel (%p227) target = $region40
    $region39: #{value_network_forward.1} parent=5 // pred_region
      // Predicated region
      $region41: #{value_network_forward.1} parent=39 // pred_check
        %p230 = pneg %p35
      $region42: #{value_network_forward.1} parent=39 // pred_check_branch
        %232 = sbr.rel (%p230) target = $region44
      $region43: #{value_network_forward.1} parent=39 // pred_region
        %s233 = smul.u32 13, %s15
        %s234 = ssub.s32 25, %s233
        %p235 = scmp.lt.s32.totalorder %s234, 13
        %s236 = scalar_select %p235, %s234, 13
        %s237 = smul.u32 128, %s236
        %p238 = scmp.lt.s32.totalorder %s233, 24
        %s239 = scalar_select %p238, %s233, 24
        %s240 = smul.addr %s239, 8
        %s241 = scalar_lea.vmem %s0, %s240
        %s242 = smul.u32 13, %s15
        %s243 = ssub.s32 25, %s242
        %p244 = scmp.lt.s32.totalorder %s243, 13
        %s245 = scalar_select %p244, %s243, 13
        %s246 = smul.u32 128, %s245
      $region44: #{value_network_forward.1} parent=39 // pred_fallthru
        _
    $region40: #{value_network_forward.1} parent=5 // pred_fallthru
      _
    %p247 = scmp.le.s32.totalorder 1, %s15
    %p248 = scmp.lt.s32.totalorder %s15, 3
    %p249 = pnand %p247, %p248
    %p250 = pneg %p249
    // Predicated region
    $region45: #{value_network_forward.1} parent=5 // pred_check
      _
    $region46: #{value_network_forward.1} parent=5 // pred_check_branch
      %252 = sbr.rel (%p249) target = $region48
    $region47: #{value_network_forward.1} parent=5 // pred_region
      %s253 = ssub.s32 %s15, 1
      %s254 = smul.u32 13, %s20
      %s255 = ssub.s32 25, %s254
      %p256 = scmp.lt.s32.totalorder %s255, 13
      %s257 = scalar_select %p256, %s255, 13
      %s258 = smul.u32 128, %s257
      %p259 = scmp.lt.s32.totalorder %s254, 24
      %s260 = scalar_select %p259, %s254, 24
      %s261 = smul.addr %s260, 8
      %s262 = scalar_lea.vmem %s0, %s261
      %p263 = pneg %p41
      %p264 = pneg %p38
      %p265 = pneg %p62
      %p266 = pneg %p59
      %p267 = pneg %p83
      %p268 = pneg %p80
      %p269 = pneg %p104
      %p270 = pneg %p101
      %p271 = pneg %p125
      %p272 = pneg %p122
      %p273 = pneg %p146
      %p274 = pneg %p143
      %p275 = pneg %p167
      %p276 = pneg %p164
      %p277 = pneg %p193
      %p278 = pneg %p190
      %p279 = scmp.lt.s32.totalorder %s20, 1
      %s280 = scalar_select %p279, %s20, 1
      %s281 = scalar_lea.vmem %s7, %s280
      %s282 = smul.u32 13, %s20
      %s283 = ssub.s32 25, %s282
      %p284 = scmp.lt.s32.totalorder %s283, 13
      %s285 = scalar_select %p284, %s283, 13
      %s286 = smul.u32 128, %s285
      %p287 = scmp.lt.s32.totalorder %s282, 24
      %s288 = scalar_select %p287, %s282, 24
      %s289 = smul.addr %s288, 8
      %s290 = scalar_lea.vmem %s0, %s289
      %s291 = smul.u32 13, %s20
      %s292 = ssub.s32 25, %s291
      %p293 = scmp.lt.s32.totalorder %s292, 13
      %s294 = scalar_select %p293, %s292, 13
      %s295 = smul.u32 128, %s294
      %p296 = scmp.lt.s32.totalorder %s20, 1
      %s297 = scalar_select %p296, %s20, 1
      %s298 = scalar_lea.vmem %s7, %s297
      %v300 = vld [vmem:[%s290] sm:$0xff]
      %v301 = vld [vmem:[%s290 + $0x8] sm:$0xff]
      %v302 = vld [vmem:[%s290 + $0x10] sm:$0xff]
      %v303 = vld [vmem:[%s290 + $0x18] sm:$0xff]
      %v304 = vld [vmem:[%s290 + $0x20] sm:$0xff]
      %v305 = vld [vmem:[%s290 + $0x28] sm:$0xff]
      %v306 = vld [vmem:[%s290 + $0x30] sm:$0xff]
      %v307 = vld [vmem:[%s290 + $0x38] sm:$0xff]
      %v308 = vld [vmem:[%s290 + $0x40] sm:$0xff]
      %v309 = vld [vmem:[%s290 + $0x48] sm:$0xff]
      %v310 = vld [vmem:[%s290 + $0x50] sm:$0xff]
      %v311 = vld [vmem:[%s290 + $0x58] sm:$0xff]
      %v312 = vld [vmem:[%s290 + $0x60] sm:$0xff]
      %v313 = vpack.c.bf16 %v301, %v300
      %v314 = vpack.c.bf16 %v303, %v302
      %v315 = vpack.c.bf16 %v305, %v304
      %v316 = vpack.c.bf16 %v307, %v306
      %v317 = vpack.c.bf16 %v309, %v308
      %v318 = vpack.c.bf16 %v311, %v310
      %v319 = vpack.c.bf16 %v312, %v312
      %v320 = vld [vmem:[%s1] sm:$0xf]
      %v321 = vld [vmem:[%s1 + $0x4] sm:$0xf]
      %v322 = vld [vmem:[%s1 + $0x8] sm:$0xf]
      %v323 = vld [vmem:[%s1 + $0xc] sm:$0xf]
      %v324 = vld [vmem:[%s2] sm:$0x1]
      %v326 = vlaneseq
      %v327 = vshrl.u32 %v326, 7
      %v328 = vsub.s32 0, %v327
      %v329 = vrot.slane %v324, %v328
      %v335 = vunpack.c.l.b16 %v320
      %v336 = vunpack.c.l.b16 %v321
      %v337 = vunpack.c.l.b16 %v322
      %v338 = vunpack.c.l.b16 %v323
      %v339 = vpack.c.b16 %v336, %v335
      %v340 = vpack.c.b16 %v338, %v337
      %vm343 = vcmask 261120
      %v345 = vsel %vm343, %v313, 0
      %v348 = vsel %vm343, %v314, 0
      %v351 = vsel %vm343, %v315, 0
      %v354 = vsel %vm343, %v316, 0
      %v357 = vsel %vm343, %v317, 0
      %v360 = vsel %vm343, %v318, 0
      %v363 = vsel %vm343, %v319, 0
      %365 = vmatprep.subr.bf16.mxu0 0
      %366 = vmatpush1.bf16.msra.mxu0 %v339
      %367 = vmatprep.subr.bf16.mxu0 0
      %368 = vmatpush1.bf16.msra.mxu0 %v340
      %369 = vmatprep.subr.bf16.mxu0 0
      %370 = vmatpush1.bf16.msra.mxu0 0
      %371 = vmatprep.subr.bf16.mxu0 0
      %372 = vmatpush1.bf16.msra.mxu0 0
      %373 = vmatprep.subr.bf16.mxu0 0
      %374 = vmatpush1.bf16.msra.mxu0 0
      %375 = vmatprep.subr.bf16.mxu0 0
      %376 = vmatpush1.bf16.msra.mxu0 0
      %377 = vmatprep.subr.bf16.mxu0 0
      %378 = vmatpush1.bf16.msra.mxu0 0
      %379 = vmatprep.subr.bf16.mxu0 0
      %380 = vmatpush1.bf16.msra.mxu0 0
      %381 = vmatprep.subr.bf16.mxu0 0
      %382 = vmatpush1.bf16.msra.mxu0 0
      %383 = vmatprep.subr.bf16.mxu0 0
      %384 = vmatpush1.bf16.msra.mxu0 0
      %385 = vmatprep.subr.bf16.mxu0 0
      %386 = vmatpush1.bf16.msra.mxu0 0
      %387 = vmatprep.subr.bf16.mxu0 0
      %388 = vmatpush1.bf16.msra.mxu0 0
      %389 = vmatprep.subr.bf16.mxu0 0
      %390 = vmatpush1.bf16.msra.mxu0 0
      %391 = vmatprep.subr.bf16.mxu0 0
      %392 = vmatpush1.bf16.msra.mxu0 0
      %393 = vmatprep.subr.bf16.mxu0 0
      %394 = vmatpush1.bf16.msra.mxu0 0
      %395 = vmatprep.subr.bf16.mxu0 0
      %396 = vmatpush1.bf16.msra.mxu0 0
      %397 = vmatprep.mubr.bf16.mxu0 0
      %398 = vmatmul.mubr.bf16.gmra.mrb[0].mxu0 %v345
      %v399 = vpop.f32.mrb[0].mxu0
      %v400 = vadd.f32 %v329, %v399
      %v401 = vpop.f32.mrb[0].mxu0
      %v402 = vpop.f32.mrb[0].mxu0
      %v403 = vadd.f32 %v329, %v402
      %v404 = vpop.f32.mrb[0].mxu0
      %405 = vmatprep.mubr.bf16.mxu0 0
      %406 = vmatmul.mubr.bf16.gmra.mrb[0].mxu0 %v348
      %v407 = vpop.f32.mrb[0].mxu0
      %v408 = vadd.f32 %v329, %v407
      %v409 = vpop.f32.mrb[0].mxu0
      %v410 = vpop.f32.mrb[0].mxu0
      %v411 = vadd.f32 %v329, %v410
      %v412 = vpop.f32.mrb[0].mxu0
      %413 = vmatprep.mubr.bf16.mxu0 0
      %414 = vmatmul.mubr.bf16.gmra.mrb[0].mxu0 %v351
      %v415 = vpop.f32.mrb[0].mxu0
      %v416 = vadd.f32 %v329, %v415
      %v417 = vpop.f32.mrb[0].mxu0
      %v418 = vpop.f32.mrb[0].mxu0
      %v419 = vadd.f32 %v329, %v418
      %v420 = vpop.f32.mrb[0].mxu0
      %421 = vmatprep.mubr.bf16.mxu0 0
      %422 = vmatmul.mubr.bf16.gmra.mrb[0].mxu0 %v354
      %v423 = vpop.f32.mrb[0].mxu0
      %v424 = vadd.f32 %v329, %v423
      %v425 = vpop.f32.mrb[0].mxu0
      %v426 = vpop.f32.mrb[0].mxu0
      %v427 = vadd.f32 %v329, %v426
      %v428 = vpop.f32.mrb[0].mxu0
      %429 = vmatprep.mubr.bf16.mxu0 0
      %430 = vmatmul.mubr.bf16.gmra.mrb[0].mxu0 %v357
      %v431 = vpop.f32.mrb[0].mxu0
      %v432 = vadd.f32 %v329, %v431
      %v433 = vpop.f32.mrb[0].mxu0
      %v434 = vpop.f32.mrb[0].mxu0
      %v435 = vadd.f32 %v329, %v434
      %v436 = vpop.f32.mrb[0].mxu0
      %437 = vmatprep.mubr.bf16.mxu0 0
      %438 = vmatmul.mubr.bf16.gmra.mrb[0].mxu0 %v360
      %v439 = vpop.f32.mrb[0].mxu0
      %v440 = vadd.f32 %v329, %v439
      %v441 = vpop.f32.mrb[0].mxu0
      %v442 = vpop.f32.mrb[0].mxu0
      %v443 = vadd.f32 %v329, %v442
      %v444 = vpop.f32.mrb[0].mxu0
      %445 = vmatprep.mubr.bf16.mxu0 0
      %446 = vmatmul.mubr.bf16.gmra.mrb[0].mxu0 %v363
      %v447 = vpop.f32.mrb[0].mxu0
      %v448 = vadd.f32 %v329, %v447
      %v449 = vpop.f32.mrb[0].mxu0
      %v450 = vpop.f32.mrb[0].mxu0
      %v451 = vpop.f32.mrb[0].mxu0
      %452 = vdwg.mxu0
      %v453 = vmax.f32 %v400, 0.0
      %v454 = vmax.f32 %v403, 0.0
      %v455 = vmax.f32 %v408, 0.0
      %v456 = vmax.f32 %v411, 0.0
      %v457 = vmax.f32 %v416, 0.0
      %v458 = vmax.f32 %v419, 0.0
      %v459 = vmax.f32 %v424, 0.0
      %v460 = vmax.f32 %v427, 0.0
      %v461 = vmax.f32 %v432, 0.0
      %v462 = vmax.f32 %v435, 0.0
      %v463 = vmax.f32 %v440, 0.0
      %v464 = vmax.f32 %v443, 0.0
      %v465 = vmax.f32 %v448, 0.0
      %v466 = vpack.c.bf16 %v454, %v453
      %v467 = vpack.c.bf16 %v456, %v455
      %v468 = vpack.c.bf16 %v458, %v457
      %v469 = vpack.c.bf16 %v460, %v459
      %v470 = vpack.c.bf16 %v462, %v461
      %v471 = vpack.c.bf16 %v464, %v463
      %v472 = vpack.c.bf16 %v465, %v465
      %v473 = vld [vmem:[%s3] sm:$0xf]
      %v474 = vld [vmem:[%s3 + $0x4] sm:$0xf]
      %v475 = vld [vmem:[%s3 + $0x8] sm:$0xf]
      %v476 = vld [vmem:[%s3 + $0xc] sm:$0xf]
      %v477 = vld [vmem:[%s3 + $0x10] sm:$0xf]
      %v478 = vld [vmem:[%s3 + $0x14] sm:$0xf]
      %v479 = vld [vmem:[%s3 + $0x18] sm:$0xf]
      %v480 = vld [vmem:[%s3 + $0x1c] sm:$0xf]
      %v481 = vld [vmem:[%s3 + $0x20] sm:$0xf]
      %v482 = vld [vmem:[%s3 + $0x24] sm:$0xf]
      %v483 = vld [vmem:[%s3 + $0x28] sm:$0xf]
      %v484 = vld [vmem:[%s3 + $0x2c] sm:$0xf]
      %v485 = vld [vmem:[%s3 + $0x30] sm:$0xf]
      %v486 = vld [vmem:[%s3 + $0x34] sm:$0xf]
      %v487 = vld [vmem:[%s3 + $0x38] sm:$0xf]
      %v488 = vld [vmem:[%s3 + $0x3c] sm:$0xf]
      %v489 = vld [vmem:[%s4] sm:$0x1]
      %v491 = vlaneseq
      %v492 = vshrl.u32 %v491, 7
      %v493 = vsub.s32 0, %v492
      %v494 = vrot.slane %v489, %v493
      %v512 = vunpack.c.l.b16 %v473
      %v513 = vunpack.c.l.b16 %v474
      %v514 = vunpack.c.l.b16 %v475
      %v515 = vunpack.c.l.b16 %v476
      %v516 = vunpack.c.l.b16 %v477
      %v517 = vunpack.c.l.b16 %v478
      %v518 = vunpack.c.l.b16 %v479
      %v519 = vunpack.c.l.b16 %v480
      %v520 = vunpack.c.l.b16 %v481
      %v521 = vunpack.c.l.b16 %v482
      %v522 = vunpack.c.l.b16 %v483
      %v523 = vunpack.c.l.b16 %v484
      %v524 = vunpack.c.l.b16 %v485
      %v525 = vunpack.c.l.b16 %v486
      %v526 = vunpack.c.l.b16 %v487
      %v527 = vunpack.c.l.b16 %v488
      %v528 = vpack.c.b16 %v513, %v512
      %v529 = vpack.c.b16 %v515, %v514
      %v530 = vpack.c.b16 %v517, %v516
      %v531 = vpack.c.b16 %v519, %v518
      %v532 = vpack.c.b16 %v521, %v520
      %v533 = vpack.c.b16 %v523, %v522
      %v534 = vpack.c.b16 %v525, %v524
      %v535 = vpack.c.b16 %v527, %v526
      %544 = vmatprep.subr.bf16.mxu0 0
      %545 = vmatpush1.bf16.msra.mxu0 %v528
      %546 = vmatprep.subr.bf16.mxu0 0
      %547 = vmatpush1.bf16.msra.mxu0 %v529
      %548 = vmatprep.subr.bf16.mxu0 0
      %549 = vmatpush1.bf16.msra.mxu0 %v530
      %550 = vmatprep.subr.bf16.mxu0 0
      %551 = vmatpush1.bf16.msra.mxu0 %v531
      %552 = vmatprep.subr.bf16.mxu0 0
      %553 = vmatpush1.bf16.msra.mxu0 %v532
      %554 = vmatprep.subr.bf16.mxu0 0
      %555 = vmatpush1.bf16.msra.mxu0 %v533
      %556 = vmatprep.subr.bf16.mxu0 0
      %557 = vmatpush1.bf16.msra.mxu0 %v534
      %558 = vmatprep.subr.bf16.mxu0 0
      %559 = vmatpush1.bf16.msra.mxu0 %v535
      %560 = vmatprep.subr.bf16.mxu0 0
      %561 = vmatpush1.bf16.msra.mxu0 0
      %562 = vmatprep.subr.bf16.mxu0 0
      %563 = vmatpush1.bf16.msra.mxu0 0
      %564 = vmatprep.subr.bf16.mxu0 0
      %565 = vmatpush1.bf16.msra.mxu0 0
      %566 = vmatprep.subr.bf16.mxu0 0
      %567 = vmatpush1.bf16.msra.mxu0 0
      %568 = vmatprep.subr.bf16.mxu0 0
      %569 = vmatpush1.bf16.msra.mxu0 0
      %570 = vmatprep.subr.bf16.mxu0 0
      %571 = vmatpush1.bf16.msra.mxu0 0
      %572 = vmatprep.subr.bf16.mxu0 0
      %573 = vmatpush1.bf16.msra.mxu0 0
      %574 = vmatprep.subr.bf16.mxu0 0
      %575 = vmatpush1.bf16.msra.mxu0 0
      %576 = vmatprep.mubr.bf16.mxu0 0
      %577 = vmatmul.mubr.bf16.gmra.mrb[0].mxu0 %v466
      %v578 = vpop.f32.mrb[0].mxu0
      %v579 = vadd.f32 %v494, %v578
      %v580 = vpop.f32.mrb[0].mxu0
      %v581 = vpop.f32.mrb[0].mxu0
      %v582 = vadd.f32 %v494, %v581
      %v583 = vpop.f32.mrb[0].mxu0
      %584 = vmatprep.mubr.bf16.mxu0 0
      %585 = vmatmul.mubr.bf16.gmra.mrb[0].mxu0 %v467
      %v586 = vpop.f32.mrb[0].mxu0
      %v587 = vadd.f32 %v494, %v586
      %v588 = vpop.f32.mrb[0].mxu0
      %v589 = vpop.f32.mrb[0].mxu0
      %v590 = vadd.f32 %v494, %v589
      %v591 = vpop.f32.mrb[0].mxu0
      %592 = vmatprep.mubr.bf16.mxu0 0
      %593 = vmatmul.mubr.bf16.gmra.mrb[0].mxu0 %v468
      %v594 = vpop.f32.mrb[0].mxu0
      %v595 = vadd.f32 %v494, %v594
      %v596 = vpop.f32.mrb[0].mxu0
      %v597 = vpop.f32.mrb[0].mxu0
      %v598 = vadd.f32 %v494, %v597
      %v599 = vpop.f32.mrb[0].mxu0
      %600 = vmatprep.mubr.bf16.mxu0 0
      %601 = vmatmul.mubr.bf16.gmra.mrb[0].mxu0 %v469
      %v602 = vpop.f32.mrb[0].mxu0
      %v603 = vadd.f32 %v494, %v602
      %v604 = vpop.f32.mrb[0].mxu0
      %v605 = vpop.f32.mrb[0].mxu0
      %v606 = vadd.f32 %v494, %v605
      %v607 = vpop.f32.mrb[0].mxu0
      %608 = vmatprep.mubr.bf16.mxu0 0
      %609 = vmatmul.mubr.bf16.gmra.mrb[0].mxu0 %v470
      %v610 = vpop.f32.mrb[0].mxu0
      %v611 = vadd.f32 %v494, %v610
      %v612 = vpop.f32.mrb[0].mxu0
      %v613 = vpop.f32.mrb[0].mxu0
      %v614 = vadd.f32 %v494, %v613
      %v615 = vpop.f32.mrb[0].mxu0
      %616 = vmatprep.mubr.bf16.mxu0 0
      %617 = vmatmul.mubr.bf16.gmra.mrb[0].mxu0 %v471
      %v618 = vpop.f32.mrb[0].mxu0
      %v619 = vadd.f32 %v494, %v618
      %v620 = vpop.f32.mrb[0].mxu0
      %v621 = vpop.f32.mrb[0].mxu0
      %v622 = vadd.f32 %v494, %v621
      %v623 = vpop.f32.mrb[0].mxu0
      %624 = vmatprep.mubr.bf16.mxu0 0
      %625 = vmatmul.mubr.bf16.gmra.mrb[0].mxu0 %v472
      %v626 = vpop.f32.mrb[0].mxu0
      %v627 = vadd.f32 %v494, %v626
      %v628 = vpop.f32.mrb[0].mxu0
      %v629 = vpop.f32.mrb[0].mxu0
      %v630 = vpop.f32.mrb[0].mxu0
      %631 = vdwg.mxu0
      %v632 = vmax.f32 %v579, 0.0
      %v633 = vmax.f32 %v582, 0.0
      %v634 = vmax.f32 %v587, 0.0
      %v635 = vmax.f32 %v590, 0.0
      %v636 = vmax.f32 %v595, 0.0
      %v637 = vmax.f32 %v598, 0.0
      %v638 = vmax.f32 %v603, 0.0
      %v639 = vmax.f32 %v606, 0.0
      %v640 = vmax.f32 %v611, 0.0
      %v641 = vmax.f32 %v614, 0.0
      %v642 = vmax.f32 %v619, 0.0
      %v643 = vmax.f32 %v622, 0.0
      %v644 = vmax.f32 %v627, 0.0
      %v645 = vld [vmem:[%s5] sm:$0xff]
      %646 = vmatprep.subr.mxu0 0.0
      %647 = vmatpush1.xpose.msra.mxu0 %v632
      %648 = vmatprep.subr.mxu0 0.0
      %649 = vmatpush1.xpose.msra.mxu0 %v633
      %650 = vmatprep.subr.mxu0 0.0
      %651 = vmatpush1.xpose.msra.mxu0 %v634
      %652 = vmatprep.subr.mxu0 0.0
      %653 = vmatpush1.xpose.msra.mxu0 %v635
      %654 = vmatprep.subr.mxu0 0.0
      %655 = vmatpush1.xpose.msra.mxu0 %v636
      %656 = vmatprep.subr.mxu0 0.0
      %657 = vmatpush1.xpose.msra.mxu0 %v637
      %658 = vmatprep.subr.mxu0 0.0
      %659 = vmatpush1.xpose.msra.mxu0 %v638
      %660 = vmatprep.subr.mxu0 0.0
      %661 = vmatpush1.xpose.msra.mxu0 %v639
      %662 = vmatprep.subr.mxu0 0.0
      %663 = vmatpush1.xpose.msra.mxu0 %v640
      %664 = vmatprep.subr.mxu0 0.0
      %665 = vmatpush1.xpose.msra.mxu0 %v641
      %666 = vmatprep.subr.mxu0 0.0
      %667 = vmatpush1.xpose.msra.mxu0 %v642
      %668 = vmatprep.subr.mxu0 0.0
      %669 = vmatpush1.xpose.msra.mxu0 %v643
      %670 = vmatprep.subr.mxu0 0.0
      %671 = vmatpush1.xpose.msra.mxu0 %v644
      %672 = vmatprep.subr.mxu0 0.0
      %673 = vmatpush1.xpose.msra.mxu0 0.0
      %674 = vmatprep.subr.mxu0 0.0
      %675 = vmatpush1.xpose.msra.mxu0 0.0
      %676 = vmatprep.subr.mxu0 0.0
      %677 = vmatpush1.xpose.msra.mxu0 0.0
      %678 = vmatprep.subr.mxu0 0.0
      %679 = vmatpush1.xpose.msra.mxu0 0.0
      %680 = vmatprep.subr.mxu0 0.0
      %681 = vmatpush1.xpose.msra.mxu0 0.0
      %682 = vmatprep.subr.mxu0 0.0
      %683 = vmatpush1.xpose.msra.mxu0 0.0
      %684 = vmatprep.subr.mxu0 0.0
      %685 = vmatpush1.xpose.msra.mxu0 0.0
      %686 = vmatprep.subr.mxu0 0.0
      %687 = vmatpush1.xpose.msra.mxu0 0.0
      %688 = vmatprep.subr.mxu0 0.0
      %689 = vmatpush1.xpose.msra.mxu0 0.0
      %690 = vmatprep.subr.mxu0 0.0
      %691 = vmatpush1.xpose.msra.mxu0 0.0
      %692 = vmatprep.subr.mxu0 0.0
      %693 = vmatpush1.xpose.msra.mxu0 0.0
      %694 = vmatprep.subr.mxu0 0.0
      %695 = vmatpush1.xpose.msra.mxu0 0.0
      %696 = vmatprep.subr.mxu0 0.0
      %697 = vmatpush1.xpose.msra.mxu0 0.0
      %698 = vmatprep.subr.mxu0 0.0
      %699 = vmatpush1.xpose.msra.mxu0 0.0
      %700 = vmatprep.subr.mxu0 0.0
      %701 = vmatpush1.xpose.msra.mxu0 0.0
      %702 = vmatprep.subr.mxu0 0.0
      %703 = vmatpush1.xpose.msra.mxu0 0.0
      %704 = vmatprep.subr.mxu0 0.0
      %705 = vmatpush1.xpose.msra.mxu0 0.0
      %706 = vmatprep.subr.mxu0 0.0
      %707 = vmatpush1.xpose.msra.mxu0 0.0
      %708 = vmatprep.subr.mxu0 0.0
      %709 = vmatpush1.xpose.msra.mxu0 0.0
      %710 = vmatprep.mubr.f32.mxu0 0.0
      %711 = vmatmul.mubr.f32.gmra.mrb[0].mxu0 %v645
      %v712 = vpop.f32.mrb[0].mxu0
      %v713 = vadd.f32 0.0, %v712
      %v714 = vpop.f32.mrb[0].mxu0
      %715 = vdwg.mxu0
      %v716 = vld [vmem:[#allocation2] sm:$0x1]
      %718 = vset.pattern.permute.xlu0 0
      %719 = vperm.xlu0 %718, %v716
      %v720 = vpop.permute.xlu0 %719
      %v722 = vlaneseq
      %v723 = vshrl.u32 %v722, 7
      %v724 = vsub.s32 0, %v723
      %v725 = vrot.slane %v720, %v724
      %v726 = vadd.f32 %v713, %v725
      %v727 = vtanh.pop %v726
      %vm728 = vcmask 843776
      %729 = vst.msk [vmem:[%s298] sm:$0x1] %vm728, %v727
      %p730 = scmp.lt.s32.totalorder %s20, 1
      %s731 = scalar_select %p730, %s20, 1
      %s732 = scalar_lea.vmem %s7, %s731
      // Predicated region
      $region49: #{value_network_forward.1} parent=47 // pred_check
        %p733 = pneg %p190
      $region50: #{value_network_forward.1} parent=47 // pred_check_branch
        %735 = sbr.rel (%p733) target = $region52
      $region51: #{value_network_forward.1} parent=47 // pred_region
        _
      $region52: #{value_network_forward.1} parent=47 // pred_fallthru
        _
    $region48: #{value_network_forward.1} parent=5 // pred_fallthru
      _
    %p736 = scmp.le.s32.totalorder 2, %s15
    // Predicated region
    $region53: #{value_network_forward.1} parent=5 // pred_check
      %p737 = pneg %p736
    $region54: #{value_network_forward.1} parent=5 // pred_check_branch
      %739 = sbr.rel (%p737) target = $region56
    $region55: #{value_network_forward.1} parent=5 // pred_region
      %s740 = ssub.s32 %s15, 2
      // Predicated region
      $region57: #{value_network_forward.1} parent=55 // pred_check
        %p741 = pneg %p196
      $region58: #{value_network_forward.1} parent=55 // pred_check_branch
        %743 = sbr.rel (%p741) target = $region60
      $region59: #{value_network_forward.1} parent=55 // pred_region
        %p744 = scmp.lt.s32.totalorder %s21, 1
        %s745 = scalar_select %p744, %s21, 1
        %s746 = scalar_lea.vmem %s7, %s745
      $region60: #{value_network_forward.1} parent=55 // pred_fallthru
        _
    $region56: #{value_network_forward.1} parent=5 // pred_fallthru
      _
  $region6: #{value_network_forward.1} parent=0 // loop_footer
    %s19 = sadd.s32 1, %s15
  $region7: #{value_network_forward.1} parent=0 // loop_footer_branch
    %14 = sbr.rel target = $region3
  $region8: #{value_network_forward.1} parent=0 // loop_exit
    _

</llo_original>
